<compile_context>
chip_gen: v7x
topology: tpu7x:2x2x1
jax: 0.10.0
libtpu: 0.0.40
codegen_flags: <defaults>
</compile_context>

<pallas_src>
import functools

import jax
import jax.numpy as jnp
from jax.experimental import pallas as pl
from jax.experimental.pallas import tpu as pltpu


def _round_up(x, m):
    return ((x + m - 1) // m) * m


def _pad_feature_dim(d):
    """Output-feature (lane) padding: always >=128 (lane-dense stores); 256-aligned
    for larger dims to fill the 256-wide MXU on v6e/v7x."""
    if d <= 128:
        return 128
    align = 256 if d >= 256 else 128
    return _round_up(d, align)


def _pad_contract_dim(d):
    """Contraction (K) padding: small dims stay unpadded/untiled (block == full dim)."""
    if d < 128:
        return d
    align = 256 if d >= 256 else 128
    return _round_up(d, align)


def _vmem_budget_bytes():
    """Generation-aware scoped-VMEM budget: 3/4 of physical per-core VMEM.
    ~96 MiB on v5e/v6e (128 MiB phys), ~48 MiB on v7x (64 MiB/TC)."""
    cap = 64 * 1024 * 1024
    try:
        cap = int(pltpu.get_tpu_info().vmem_capacity_bytes)
    except Exception:
        pass
    return (cap * 3) // 4


def _select_tiles(n_pad, d_in_p, d_out_p, sz_mm, sz_out, use_scratch, budget):
    """Pick (tn, tk, x_resident) from an explicit VMEM footprint model."""
    tn_cands = [c for c in (512, 256, 128) if d_out_p % c == 0]
    if d_in_p < 128:
        tk_cands = [d_in_p]
    else:
        tk_cands = [c for c in (1024, 512, 256, 128) if d_in_p % c == 0]

    # Keep x resident in VMEM across all feature tiles when it comfortably fits:
    # it is then DMA'd from HBM once instead of (d_out_p // tn) times.
    x_resident = (d_in_p >= 128) and (2 * n_pad * d_in_p * sz_mm <= budget // 3)

    def footprint(tn, tk, x_res, w_bufs=3):
        x_b = 2 * n_pad * (d_in_p if x_res else tk) * sz_mm   # conservative 2x
        w_b = w_bufs * tk * tn * sz_mm
        v_b = 2 * 2 * tn * 4                                   # gamma, beta
        o_b = 2 * n_pad * tn * sz_out
        a_b = n_pad * tn * 4 if use_scratch else 0
        return x_b + w_b + v_b + o_b + a_b

    tn, tk = tn_cands[-1], tk_cands[-1]
    found = False
    for tn_c in tn_cands:
        for tk_c in tk_cands:
            if footprint(tn_c, tk_c, x_resident) <= budget:
                tn, tk, found = tn_c, tk_c, True
                break
        if found:
            break
    if not found:
        x_resident = False  # minimal-footprint fallback (large N): stream everything

    # Keep >= 2 feature tiles so the "parallel" axis can shard across v7x's 2 TCs.
    if d_out_p // tn == 1 and tn >= 256:
        tn //= 2

    if d_in_p // tk == 1:
        x_resident = False  # single K step: residency is moot; use the simple stream

    # TODO(synk): for very large N an N-tiled matmul + two-pass BN (per-feature
    #             sum / sum-of-squares scratch) would remove the untiled-batch
    #             VMEM scaling entirely; not needed at these shapes.
    return tn, tk, x_resident


def fc_block_kernel(x_ref, w_ref, gamma_ref, beta_ref, o_ref, *scratch,
                    leaky_slope, eps, inv_n, tk, x_resident):
    """Fused Linear + BatchNorm1d(batch stats) + LeakyReLU.

    Grid = (D_out tiles [parallel], K tiles [arbitrary/reduction]).

    x_ref:     (N, d_in_p) if x_resident else (N, tk)   VMEM (f32 or bf16)
    w_ref:     (tk, tn)    VMEM (f32 or bf16)  -- PyTorch weight transposed
    gamma_ref: (1, tn)     VMEM f32
    beta_ref:  (1, tn)     VMEM f32
    o_ref:     (N, tn)     VMEM
    scratch:   optional (N, tn) f32 accumulator; when the output dtype is f32 the
               output block itself is the accumulator (it is resident across K).
    """
    acc = scratch[0] if scratch else o_ref
    k = pl.program_id(1)

    @pl.when(k == 0)
    def _():
        acc[...] = jnp.zeros_like(acc)

    if x_resident:
        x_blk = x_ref[:, pl.ds(pl.multiple_of(k * tk, 128), tk)]
    else:
        x_blk = x_ref[...]

    # Inner loop: pure MXU contraction, f32 accumulation.
    acc[...] += jnp.dot(x_blk, w_ref[...], preferred_element_type=jnp.float32)

    @pl.when(k == pl.num_programs(1) - 1)
    def _():
        z = acc[...]                                          # (N, tn) f32
        # BatchNorm1d training-mode forward (biased variance over the real batch).
        # sum / sum-of-squares form: zero-padded batch rows contribute nothing.
        mean = jnp.sum(z, axis=0, keepdims=True) * inv_n
        ex2 = jnp.sum(z * z, axis=0, keepdims=True) * inv_n
        var = jnp.maximum(ex2 - mean * mean, 0.0)
        scale = jax.lax.rsqrt(var + eps) * gamma_ref[...]     # (1, tn)
        shift = beta_ref[...] - mean * scale                  # (1, tn)
        y = z * scale + shift
        # Dropout(p=0.2): identity (eval semantics).
        y = jnp.maximum(y, leaky_slope * y)                   # LeakyReLU
        o_ref[...] = y.astype(o_ref.dtype)


def prepare_fc_params(weight_t, bias, gamma, beta, *, matmul_dtype=jnp.bfloat16):
    """Pad + cast the layer parameters ONCE, outside the per-call hot path.

    weight_t: (D_in, D_out) = PyTorch nn.Linear weight transposed.
    `bias` is accepted for API fidelity but not used by the kernel: BatchNorm's
    mean subtraction cancels the Linear bias exactly in the forward output.
    gamma/beta are zero-padded so padded feature columns output exactly 0.
    """
    d_in, d_out = weight_t.shape
    d_in_p = _pad_contract_dim(d_in)
    d_out_p = _pad_feature_dim(d_out)

    wm = weight_t.astype(matmul_dtype)
    if d_in_p != d_in or d_out_p != d_out:
        wm = jnp.pad(wm, ((0, d_in_p - d_in), (0, d_out_p - d_out)))

    def _pad_row(v):
        v = v.astype(jnp.float32).reshape(1, d_out)
        if d_out_p != d_out:
            v = jnp.pad(v, ((0, 0), (0, d_out_p - d_out)))
        return v

    return {
        "wm": wm,
        "gamma": _pad_row(gamma),
        "beta": _pad_row(beta),
        "d_in": d_in, "d_out": d_out,
        "d_in_p": d_in_p, "d_out_p": d_out_p,
        "matmul_dtype": jnp.dtype(matmul_dtype),
    }


def fully_connected_layer(x, params, *, leaky_slope=0.2, eps=1e-5):
    """x: (N, D_in) -> (N, D_out). BN/activation math and accumulation are f32;
    the MXU operand dtype is params['matmul_dtype'] (bf16 fast path or exact f32)."""
    n, d_in = x.shape
    assert d_in == params["d_in"], "input feature dim mismatch"
    d_out, d_in_p, d_out_p = params["d_out"], params["d_in_p"], params["d_out_p"]
    matmul_dtype = params["matmul_dtype"]
    out_dtype = x.dtype

    sz_mm = jnp.dtype(matmul_dtype).itemsize
    sz_out = jnp.dtype(out_dtype).itemsize
    use_out_as_acc = jnp.dtype(out_dtype) == jnp.dtype(jnp.float32)

    # Round N up to the sublane pack so MXU feeds / reductions stay unmasked.
    n_align = 16 if sz_mm == 2 else 8
    n_pad = _round_up(n, n_align)

    budget = _vmem_budget_bytes()
    tn, tk, x_resident = _select_tiles(n_pad, d_in_p, d_out_p, sz_mm, sz_out,
                                       not use_out_as_acc, budget)
    grid_j, grid_k = d_out_p // tn, d_in_p // tk
    w_bufs = 3 if grid_j * grid_k >= 3 else 2

    # Hot path: only x needs a per-call cast / (small) pad.
    xm = x if x.dtype == matmul_dtype else x.astype(matmul_dtype)
    if n_pad != n or d_in_p != d_in:
        xm = jnp.pad(xm, ((0, n_pad - n), (0, d_in_p - d_in)))

    if x_resident:
        x_spec = pl.BlockSpec((n_pad, d_in_p), lambda j, k: (0, 0))
    else:
        x_spec = pl.BlockSpec((n_pad, tk), lambda j, k: (0, k))

    if w_bufs > 2:
        w_spec = pl.BlockSpec((tk, tn), lambda j, k: (k, j),
                              pipeline_mode=pl.Buffered(w_bufs))
    else:
        w_spec = pl.BlockSpec((tk, tn), lambda j, k: (k, j))

    vec_spec = pl.BlockSpec((1, tn), lambda j, k: (0, j))

    kernel = functools.partial(
        fc_block_kernel, leaky_slope=leaky_slope, eps=eps, inv_n=1.0 / n,
        tk=tk, x_resident=x_resident)

    scratch_shapes = [] if use_out_as_acc else [pltpu.VMEM((n_pad, tn), jnp.float32)]

    out = pl.pallas_call(
        kernel,
        out_shape=jax.ShapeDtypeStruct((n_pad, d_out_p), out_dtype),
        grid_spec=pltpu.PrefetchScalarGridSpec(
            num_scalar_prefetch=0,
            grid=(grid_j, grid_k),
            in_specs=[x_spec, w_spec, vec_spec, vec_spec],
            out_specs=pl.BlockSpec((n_pad, tn), lambda j, k: (0, j)),
            scratch_shapes=scratch_shapes,
        ),
        compiler_params=pltpu.CompilerParams(
            dimension_semantics=("parallel", "arbitrary"),
            vmem_limit_bytes=int(budget),
        ),
    )(xm, params["wm"], params["gamma"], params["beta"])

    return out[:n, :d_out]


def _reference(x, weight_t, bias, gamma, beta, *, leaky_slope=0.2, eps=1e-5,
               matmul_dtype=jnp.float32):
    z = jnp.dot(x.astype(matmul_dtype), weight_t.astype(matmul_dtype),
                preferred_element_type=jnp.float32) + bias
    mean = z.mean(axis=0, keepdims=True)
    var = ((z - mean) ** 2).mean(axis=0, keepdims=True)
    y = (z - mean) / jnp.sqrt(var + eps) * gamma + beta
    # Dropout(p=0.2) is identity in eval mode.
    return jnp.where(y >= 0.0, y, leaky_slope * y)


def _make_params(key, d_in, d_out):
    kw, kb = jax.random.split(key)
    bound = 1.0 / (d_in ** 0.5)
    # PyTorch nn.Linear weight is (D_out, D_in); we store the transpose.
    weight_t = jax.random.uniform(kw, (d_in, d_out), dtype=jnp.float32,
                                  minval=-bound, maxval=bound)
    bias = jax.random.uniform(kb, (d_out,), dtype=jnp.float32,
                              minval=-bound, maxval=bound)
    gamma = jnp.ones((d_out,), dtype=jnp.float32)   # BatchNorm1d default init
    beta = jnp.zeros((d_out,), dtype=jnp.float32)
    return weight_t, bias, gamma, beta


if __name__ == "__main__":
    key = jax.random.PRNGKey(0)
    k1, k2, k3, k4, k5, k6 = jax.random.split(key, 6)

    # --- Test 1: small shapes, exact f32 MXU path, single-tile grid -----------
    N, D_IN, D_OUT = 8, 32, 64
    x = jax.random.normal(k1, (N, D_IN), dtype=jnp.float32)
    w_t, b, g, be = _make_params(k2, D_IN, D_OUT)
    params = prepare_fc_params(w_t, b, g, be, matmul_dtype=jnp.float32)
    out = jax.block_until_ready(fully_connected_layer(x, params))
    ref = _reference(x, w_t, b, g, be, matmul_dtype=jnp.float32)
    assert out.shape == (N, D_OUT)
    assert jnp.allclose(out, ref, atol=1e-4, rtol=1e-4), "f32 mismatch vs reference"

    # --- Test 2: multi-tile grid (parallel feature axis x K reduction), bf16 ---
    #     exercises VMEM-resident x, Buffered(3) weight stream, 256-aligned D_out.
    N2, D_IN2, D_OUT2 = 16, 768, 384
    x2 = jax.random.normal(k3, (N2, D_IN2), dtype=jnp.float32)
    w_t2, b2, g2, be2 = _make_params(k4, D_IN2, D_OUT2)
    params2 = prepare_fc_params(w_t2, b2, g2, be2, matmul_dtype=jnp.bfloat16)
    out2 = jax.block_until_ready(fully_connected_layer(x2, params2))
    ref2 = _reference(x2, w_t2, b2, g2, be2, matmul_dtype=jnp.bfloat16)
    assert out2.shape == (N2, D_OUT2)
    assert jnp.allclose(out2, ref2, atol=5e-3, rtol=5e-3), "bf16 mismatch vs reference"

    # --- Test 3: batch not a multiple of the sublane pack ----------------------
    #     padded zero rows must not perturb the BatchNorm batch statistics.
    N3, D_IN3, D_OUT3 = 6, 32, 48
    x3 = jax.random.normal(k5, (N3, D_IN3), dtype=jnp.float32)
    w_t3, b3, g3, be3 = _make_params(k6, D_IN3, D_OUT3)
    params3 = prepare_fc_params(w_t3, b3, g3, be3, matmul_dtype=jnp.float32)
    out3 = jax.block_until_ready(fully_connected_layer(x3, params3))
    ref3 = _reference(x3, w_t3, b3, g3, be3, matmul_dtype=jnp.float32)
    assert out3.shape == (N3, D_OUT3)
    assert jnp.allclose(out3, ref3, atol=1e-4, rtol=1e-4), "padded-N mismatch vs reference"

    print("KERNEL_OK")
</pallas_src>

<mosaic_0001>
module attributes {stable_mosaic.version = 11 : i64} {
  func.func @fc_block_kernel(%arg0: i32, %arg1: i32, %arg2: memref<8x32xf32, #tpu.memory_space<vmem>>, %arg3: memref<32x128xf32, #tpu.memory_space<vmem>>, %arg4: memref<1x128xf32, #tpu.memory_space<vmem>>, %arg5: memref<1x128xf32, #tpu.memory_space<vmem>>, %arg6: memref<8x128xf32, #tpu.memory_space<vmem>>) attributes {dimension_semantics = [#tpu.dimension_semantics<parallel>, #tpu.dimension_semantics<arbitrary>], iteration_bounds = array<i64: 1, 1>, scalar_prefetch = 0 : i64, scratch_operands = 0 : i64, tpu.core_type = #tpu.core_type<tc>, window_params = [{transform_indices = @transform_0, window_bounds = array<i64: 8, 32>}, {transform_indices = @transform_1, window_bounds = array<i64: 32, 128>}, {transform_indices = @transform_2, window_bounds = array<i64: 1, 128>}, {transform_indices = @transform_3, window_bounds = array<i64: 1, 128>}, {transform_indices = @transform_4, window_bounds = array<i64: 8, 128>}]} {
    %c0_i32 = arith.constant 0 : i32
    %0 = arith.cmpi eq, %arg1, %c0_i32 : i32
    %1 = arith.extui %0 : i1 to i32
    %c0_i32_0 = arith.constant 0 : i32
    %2 = arith.cmpi ne, %1, %c0_i32_0 : i32
    scf.if %2 {
      %cst_10 = arith.constant 0.000000e+00 : f32
      %12 = vector.broadcast %cst_10 : f32 to vector<8x128xf32>
      %c0_11 = arith.constant 0 : index
      %c0_12 = arith.constant 0 : index
      %13 = vector.load %arg6[%c0_11, %c0_12] : memref<8x128xf32, #tpu.memory_space<vmem>>, vector<8x128xf32>
      tpu.vector_store %arg6[%c0_11, %c0_12], %12 {strides = array<i32>} : memref<8x128xf32, #tpu.memory_space<vmem>>, vector<8x128xf32>,
    } else {
    }
    %c0 = arith.constant 0 : index
    %c0_1 = arith.constant 0 : index
    %3 = vector.load %arg2[%c0, %c0_1] : memref<8x32xf32, #tpu.memory_space<vmem>>, vector<8x32xf32>
    %c0_2 = arith.constant 0 : index
    %c0_3 = arith.constant 0 : index
    %4 = vector.load %arg6[%c0_2, %c0_3] : memref<8x128xf32, #tpu.memory_space<vmem>>, vector<8x128xf32>
    %c0_4 = arith.constant 0 : index
    %c0_5 = arith.constant 0 : index
    %5 = vector.load %arg3[%c0_4, %c0_5] : memref<32x128xf32, #tpu.memory_space<vmem>>, vector<32x128xf32>
    %cst = arith.constant dense<0.000000e+00> : vector<8x128xf32>
    %6 = tpu.matmul %3, %5, %cst {dimension_numbers = #tpu.dot_dimension_numbers<[1], [0], [0], [1], [0, 0, 1, 1], [], []>} : vector<8x32xf32>, vector<32x128xf32>, vector<8x128xf32> -> vector<8x128xf32>
    %7 = arith.addf %4, %6 : vector<8x128xf32>
    %c0_6 = arith.constant 0 : index
    %c0_7 = arith.constant 0 : index
    %8 = vector.load %arg6[%c0_6, %c0_7] : memref<8x128xf32, #tpu.memory_space<vmem>>, vector<8x128xf32>
    tpu.vector_store %arg6[%c0_6, %c0_7], %7 {strides = array<i32>} : memref<8x128xf32, #tpu.memory_space<vmem>>, vector<8x128xf32>,
    %c0_i32_8 = arith.constant 0 : i32
    %9 = arith.cmpi eq, %arg1, %c0_i32_8 : i32
    %10 = arith.extui %9 : i1 to i32
    %c0_i32_9 = arith.constant 0 : i32
    %11 = arith.cmpi ne, %10, %c0_i32_9 : i32
    scf.if %11 {
      %c0_10 = arith.constant 0 : index
      %c0_11 = arith.constant 0 : index
      %12 = vector.load %arg6[%c0_10, %c0_11] : memref<8x128xf32, #tpu.memory_space<vmem>>, vector<8x128xf32>
      %cst_12 = arith.constant dense<0.000000e+00> : vector<128xf32>
      %13 = vector.multi_reduction <add>, %12, %cst_12 [0] : vector<8x128xf32> to vector<128xf32>
      %14 = vector.shape_cast %13 : vector<128xf32> to vector<1x128xf32>
      %cst_13 = arith.constant 1.250000e-01 : f32
      %15 = vector.broadcast %cst_13 : f32 to vector<1x128xf32>
      %16 = arith.mulf %14, %15 : vector<1x128xf32>
      %17 = arith.mulf %12, %12 : vector<8x128xf32>
      %cst_14 = arith.constant dense<0.000000e+00> : vector<128xf32>
      %18 = vector.multi_reduction <add>, %17, %cst_14 [0] : vector<8x128xf32> to vector<128xf32>
      %19 = vector.shape_cast %18 : vector<128xf32> to vector<1x128xf32>
      %cst_15 = arith.constant 1.250000e-01 : f32
      %20 = vector.broadcast %cst_15 : f32 to vector<1x128xf32>
      %21 = arith.mulf %19, %20 : vector<1x128xf32>
      %22 = arith.mulf %16, %16 : vector<1x128xf32>
      %23 = arith.subf %21, %22 : vector<1x128xf32>
      %cst_16 = arith.constant 0.000000e+00 : f32
      %24 = vector.broadcast %cst_16 : f32 to vector<1x128xf32>
      %25 = arith.maximumf %23, %24 : vector<1x128xf32>
      %cst_17 = arith.constant 9.99999974E-6 : f32
      %26 = vector.broadcast %cst_17 : f32 to vector<1x128xf32>
      %27 = arith.addf %25, %26 : vector<1x128xf32>
      %28 = math.rsqrt %27 : vector<1x128xf32>
      %c0_18 = arith.constant 0 : index
      %c0_19 = arith.constant 0 : index
      %29 = vector.load %arg4[%c0_18, %c0_19] : memref<1x128xf32, #tpu.memory_space<vmem>>, vector<1x128xf32>
      %30 = arith.mulf %28, %29 : vector<1x128xf32>
      %c0_20 = arith.constant 0 : index
      %c0_21 = arith.constant 0 : index
      %31 = vector.load %arg5[%c0_20, %c0_21] : memref<1x128xf32, #tpu.memory_space<vmem>>, vector<1x128xf32>
      %32 = arith.mulf %16, %30 : vector<1x128xf32>
      %33 = arith.subf %31, %32 : vector<1x128xf32>
      %34 = vector.broadcast %30 : vector<1x128xf32> to vector<8x128xf32>
      %35 = arith.mulf %12, %34 : vector<8x128xf32>
      %36 = vector.broadcast %33 : vector<1x128xf32> to vector<8x128xf32>
      %37 = arith.addf %35, %36 : vector<8x128xf32>
      %cst_22 = arith.constant 2.000000e-01 : f32
      %38 = vector.broadcast %cst_22 : f32 to vector<8x128xf32>
      %39 = arith.mulf %38, %37 : vector<8x128xf32>
      %40 = arith.maximumf %37, %39 : vector<8x128xf32>
      %c0_23 = arith.constant 0 : index
      %c0_24 = arith.constant 0 : index
      %41 = vector.load %arg6[%c0_23, %c0_24] : memref<8x128xf32, #tpu.memory_space<vmem>>, vector<8x128xf32>
      tpu.vector_store %arg6[%c0_23, %c0_24], %40 {strides = array<i32>} : memref<8x128xf32, #tpu.memory_space<vmem>>, vector<8x128xf32>,
    } else {
    }
    return
  }
  func.func @transform_0(%arg0: i32, %arg1: i32) -> (i32, i32) {
    %c0_i32 = arith.constant 0 : i32
    %c0_i32_0 = arith.constant 0 : i32
    return %c0_i32, %arg1 : i32, i32
  }
  func.func @transform_1(%arg0: i32, %arg1: i32) -> (i32, i32) {
    %c0_i32 = arith.constant 0 : i32
    return %arg1, %arg0 : i32, i32
  }
  func.func @transform_2(%arg0: i32, %arg1: i32) -> (i32, i32) {
    %c0_i32 = arith.constant 0 : i32
    %c0_i32_0 = arith.constant 0 : i32
    return %c0_i32, %arg0 : i32, i32
  }
  func.func @transform_3(%arg0: i32, %arg1: i32) -> (i32, i32) {
    %c0_i32 = arith.constant 0 : i32
    %c0_i32_0 = arith.constant 0 : i32
    return %c0_i32, %arg0 : i32, i32
  }
  func.func @transform_4(%arg0: i32, %arg1: i32) -> (i32, i32) {
    %c0_i32 = arith.constant 0 : i32
    %c0_i32_0 = arith.constant 0 : i32
    return %c0_i32, %arg0 : i32, i32
  }
}

</mosaic_0001>

<llo_original>
// kernel: tpu_custom_call.1
$region0: #{tpu_custom_call.1}
  #allocation0 [shape = 'u32[]', space=smem, size = 0x4, offset = 0x4, fixed_abs, tag = 'smem constant byte address 0x4 - core index']
  #allocation1 [shape = 'u32[144,128]{1,0:T(1,128)}', space=vmem, size = 0x12000, scoped, tag = 'internal scratch']
  %s0 = inlined_call_operand.hbm [shape: f32[8,32], index: 0, kind: input, shape index: {}]
  %s1 = inlined_call_operand.hbm [shape: f32[32,128], index: 1, kind: input, shape index: {}]
  %s2 = inlined_call_operand.vmem [shape: f32[1,128], index: 2, kind: input, shape index: {}]
  %s3 = inlined_call_operand.vmem [shape: f32[1,128], index: 3, kind: input, shape index: {}]
  %s4 = inlined_call_operand.hbm [shape: f32[8,128], index: 4, kind: output, shape index: {}]
  %s5 = sld [smem:[#allocation0]]
  $region42: #{tpu_custom_call.1} parent=0
    _
  %s7 = ssub.s32 1, %s5
  %s8 = scalar_select 0, %s7, %s5
  $region1: #{tpu_custom_call.1} parent=0
    #allocation2 [shape = 'u8[4096]{0}', space=vmem, size = 0x1000, scoped, tag = 'input window, operand 0, single buffered']
    #allocation3 [shape = 's32[1]{0}', space=sflag, size = 0x4, scoped, tag = 'scoped memory for tpu_custom_call.1']
    #allocation4 [shape = 's32[1]{0}', space=sflag, size = 0x4, scoped, tag = 'scoped memory for tpu_custom_call.1']
    #allocation5 [shape = 'u8[16384]{0}', space=vmem, size = 0x4000, scoped, tag = 'input window, operand 1, single buffered']
    #allocation6 [shape = 's32[1]{0}', space=sflag, size = 0x4, scoped, tag = 'scoped memory for tpu_custom_call.1']
    #allocation7 [shape = 'u8[4096]{0}', space=vmem, size = 0x1000, scoped, tag = 'output window, operand 0, single buffered']
    %9 = vsyncpa [#allocation3], 0
    %10 = vsyncpa [#allocation6], 0
    %11 = vsyncpa [#allocation4], 0
    // Predicated region
    $region2: #{tpu_custom_call.1} parent=1 // pred_check
      _
    $region3: #{tpu_custom_call.1} parent=1 // pred_check_branch
      %13 = sbr.rel (0) target = $region5
    $region4: #{tpu_custom_call.1} parent=1 // pred_region
      %s15 = ssub.s32 128, 128
      %16 = vsyncadd [#allocation3], %s15
      %s18 = sshll.u32 [#allocation2], 4
      %s19 = int_to_ptr.vmem [resolvable:$true] %s18
      %21 = dma.hbm_to_vmem [thread:$0]  %s0, 128, %s19, [#allocation3]
    $region5: #{tpu_custom_call.1} parent=1 // pred_fallthru
      _
    // Predicated region
    $region6: #{tpu_custom_call.1} parent=1 // pred_check
      _
    $region7: #{tpu_custom_call.1} parent=1 // pred_check_branch
      %23 = sbr.rel (0) target = $region9
    $region8: #{tpu_custom_call.1} parent=1 // pred_region
      %s25 = ssub.s32 512, 512
      %26 = vsyncadd [#allocation6], %s25
      %s27 = sshll.u32 [#allocation5], 4
      %s28 = int_to_ptr.vmem [resolvable:$true] %s27
      %33 = dma.hbm_to_vmem [thread:$0]  %s1, 512, %s28, [#allocation6], 128, 128, 8
    $region9: #{tpu_custom_call.1} parent=1 // pred_fallthru
      _
    // Predicated region
    $region10: #{tpu_custom_call.1} parent=1 // pred_check
      _
    $region11: #{tpu_custom_call.1} parent=1 // pred_check_branch
      %35 = sbr.rel (0) target = $region13
    $region12: #{tpu_custom_call.1} parent=1 // pred_region
      _
    $region13: #{tpu_custom_call.1} parent=1 // pred_fallthru
      _
    // Predicated region
    $region14: #{tpu_custom_call.1} parent=1 // pred_check
      _
    $region15: #{tpu_custom_call.1} parent=1 // pred_check_branch
      %37 = sbr.rel (0) target = $region17
    $region16: #{tpu_custom_call.1} parent=1 // pred_region
      _
    $region17: #{tpu_custom_call.1} parent=1 // pred_fallthru
      _
    // Predicated region
    $region18: #{tpu_custom_call.1} parent=1 // pred_check
      _
    $region19: #{tpu_custom_call.1} parent=1 // pred_check_branch
      %39 = sbr.rel (0) target = $region21
    $region20: #{tpu_custom_call.1} parent=1 // pred_region
      %40 = dma.done [#allocation3], 128
    $region21: #{tpu_custom_call.1} parent=1 // pred_fallthru
      _
    // Predicated region
    $region22: #{tpu_custom_call.1} parent=1 // pred_check
      _
    $region23: #{tpu_custom_call.1} parent=1 // pred_check_branch
      %42 = sbr.rel (0) target = $region25
    $region24: #{tpu_custom_call.1} parent=1 // pred_region
      %43 = dma.done [#allocation6], 512
    $region25: #{tpu_custom_call.1} parent=1 // pred_fallthru
      _
    %p44 = scmp.eq.s32.totalorder 0, 0
    // Predicated region
    $region26: #{tpu_custom_call.1} parent=1 // pred_check
      %p45 = pneg %p44
    $region27: #{tpu_custom_call.1} parent=1 // pred_check_branch
      %47 = sbr.rel (%p45) target = $region29
    $region28: #{tpu_custom_call.1} parent=1 // pred_region
      %48 = vst [vmem:[#allocation7] sm:$0xff] 0.0
    $region29: #{tpu_custom_call.1} parent=1 // pred_fallthru
      _
    %v49 = vld [vmem:[#allocation2] sm:$0xff]
    %v50 = vld [vmem:[#allocation7] sm:$0xff]
    %v51 = vld [vmem:[#allocation5] sm:$0xff]
    %v52 = vld [vmem:[#allocation5 + $0x8] sm:$0xff]
    %v53 = vld [vmem:[#allocation5 + $0x10] sm:$0xff]
    %v54 = vld [vmem:[#allocation5 + $0x18] sm:$0xff]
    %vm55 = vcmask 261120
    %v57 = vsel %vm55, %v49, 0
    %59 = vmatprep.subr.mxu0 0.0
    %60 = vmatpush1.msra.mxu0 %v51
    %61 = vmatprep.subr.mxu0 0.0
    %62 = vmatpush1.msra.mxu0 %v52
    %63 = vmatprep.subr.mxu0 0.0
    %64 = vmatpush1.msra.mxu0 %v53
    %65 = vmatprep.subr.mxu0 0.0
    %66 = vmatpush1.msra.mxu0 %v54
    %67 = vmatprep.subr.mxu0 0.0
    %68 = vmatpush1.msra.mxu0 0.0
    %69 = vmatprep.subr.mxu0 0.0
    %70 = vmatpush1.msra.mxu0 0.0
    %71 = vmatprep.subr.mxu0 0.0
    %72 = vmatpush1.msra.mxu0 0.0
    %73 = vmatprep.subr.mxu0 0.0
    %74 = vmatpush1.msra.mxu0 0.0
    %75 = vmatprep.subr.mxu0 0.0
    %76 = vmatpush1.msra.mxu0 0.0
    %77 = vmatprep.subr.mxu0 0.0
    %78 = vmatpush1.msra.mxu0 0.0
    %79 = vmatprep.subr.mxu0 0.0
    %80 = vmatpush1.msra.mxu0 0.0
    %81 = vmatprep.subr.mxu0 0.0
    %82 = vmatpush1.msra.mxu0 0.0
    %83 = vmatprep.subr.mxu0 0.0
    %84 = vmatpush1.msra.mxu0 0.0
    %85 = vmatprep.subr.mxu0 0.0
    %86 = vmatpush1.msra.mxu0 0.0
    %87 = vmatprep.subr.mxu0 0.0
    %88 = vmatpush1.msra.mxu0 0.0
    %89 = vmatprep.subr.mxu0 0.0
    %90 = vmatpush1.msra.mxu0 0.0
    %91 = vmatprep.subr.mxu0 0.0
    %92 = vmatpush1.msra.mxu0 0.0
    %93 = vmatprep.subr.mxu0 0.0
    %94 = vmatpush1.msra.mxu0 0.0
    %95 = vmatprep.subr.mxu0 0.0
    %96 = vmatpush1.msra.mxu0 0.0
    %97 = vmatprep.subr.mxu0 0.0
    %98 = vmatpush1.msra.mxu0 0.0
    %99 = vmatprep.subr.mxu0 0.0
    %100 = vmatpush1.msra.mxu0 0.0
    %101 = vmatprep.subr.mxu0 0.0
    %102 = vmatpush1.msra.mxu0 0.0
    %103 = vmatprep.subr.mxu0 0.0
    %104 = vmatpush1.msra.mxu0 0.0
    %105 = vmatprep.subr.mxu0 0.0
    %106 = vmatpush1.msra.mxu0 0.0
    %107 = vmatprep.subr.mxu0 0.0
    %108 = vmatpush1.msra.mxu0 0.0
    %109 = vmatprep.subr.mxu0 0.0
    %110 = vmatpush1.msra.mxu0 0.0
    %111 = vmatprep.subr.mxu0 0.0
    %112 = vmatpush1.msra.mxu0 0.0
    %113 = vmatprep.subr.mxu0 0.0
    %114 = vmatpush1.msra.mxu0 0.0
    %115 = vmatprep.subr.mxu0 0.0
    %116 = vmatpush1.msra.mxu0 0.0
    %117 = vmatprep.subr.mxu0 0.0
    %118 = vmatpush1.msra.mxu0 0.0
    %119 = vmatprep.subr.mxu0 0.0
    %120 = vmatpush1.msra.mxu0 0.0
    %121 = vmatprep.subr.mxu0 0.0
    %122 = vmatpush1.msra.mxu0 0.0
    %123 = vmatprep.mubr.f32.mxu0 0.0
    %124 = vmatmul.mubr.f32.gmra.mrb[0].mxu0 %v57
    %v125 = vpop.f32.mrb[0].mxu0
    %v126 = vadd.f32 0.0, %v125
    %v127 = vpop.f32.mrb[0].mxu0
    %128 = vdwg.mxu0
    %v129 = vadd.f32 %v50, %v126
    %130 = vst [vmem:[#allocation7] sm:$0xff] %v129
    // Predicated region
    $region30: #{tpu_custom_call.1} parent=1 // pred_check
      %p131 = pneg %p44
    $region31: #{tpu_custom_call.1} parent=1 // pred_check_branch
      %133 = sbr.rel (%p131) target = $region33
    $region32: #{tpu_custom_call.1} parent=1 // pred_region
      %v134 = vld [vmem:[#allocation7] sm:$0xff]
      %v135 = vrot.slane %v134, 4
      %v136 = vadd.f32 %v134, %v135
      %v137 = vrot.slane %v136, 2
      %v138 = vadd.f32 %v136, %v137
      %v139 = vrot.slane %v138, 1
      %v140 = vadd.f32 %v138, %v139
      %v141 = vmul.f32 %v140, 0.125
      %v142 = vmul.f32 %v134, %v134
      %v143 = vrot.slane %v142, 4
      %v144 = vadd.f32 %v142, %v143
      %v145 = vrot.slane %v144, 2
      %v146 = vadd.f32 %v144, %v145
      %v147 = vrot.slane %v146, 1
      %v148 = vadd.f32 %v146, %v147
      %v149 = vmul.f32 %v148, 0.125
      %v150 = vmul.f32 %v141, %v141
      %v151 = vsub.f32 %v149, %v150
      %v152 = vmax.f32 %v151, 0.0
      %v153 = vadd.f32 %v152, 1e-05
      %v154 = vrsqrt.pop %v153
      %v155 = vld [vmem:[%s2] sm:$0x1]
      %v156 = vmul.f32 %v154, %v155
      %v157 = vld [vmem:[%s3] sm:$0x1]
      %v158 = vmul.f32 %v141, %v156
      %v159 = vsub.f32 %v157, %v158
      %v160 = vlaneseq
      %v161 = vshrl.u32 %v160, 7
      %v162 = vsub.s32 0, %v161
      %v163 = vrot.slane %v156, %v162
      %v164 = vmul.f32 %v134, %v163
      %v166 = vlaneseq
      %v167 = vshrl.u32 %v166, 7
      %v168 = vsub.s32 0, %v167
      %v169 = vrot.slane %v159, %v168
      %v171 = vadd.f32 %v164, %v169
      %v172 = vmul.f32 %v171, 0.2
      %v173 = vmax.f32 %v171, %v172
      %174 = vst [vmem:[#allocation7] sm:$0xff] %v173
    $region33: #{tpu_custom_call.1} parent=1 // pred_fallthru
      _
    // Predicated region
    $region34: #{tpu_custom_call.1} parent=1 // pred_check
      _
    $region35: #{tpu_custom_call.1} parent=1 // pred_check_branch
      %176 = sbr.rel (0) target = $region37
    $region36: #{tpu_custom_call.1} parent=1 // pred_region
      %s178 = ssub.s32 128, 128
      %179 = vsyncadd [#allocation4], %s178
      %s181 = sshll.u32 [#allocation7], 4
      %s182 = int_to_ptr.vmem [resolvable:$true] %s181
      %184 = dma.vmem_to_hbm [thread:$0]  %s182, 128, %s4, [#allocation4]
    $region37: #{tpu_custom_call.1} parent=1 // pred_fallthru
      _
    // Predicated region
    $region38: #{tpu_custom_call.1} parent=1 // pred_check
      _
    $region39: #{tpu_custom_call.1} parent=1 // pred_check_branch
      %186 = sbr.rel (0) target = $region41
    $region40: #{tpu_custom_call.1} parent=1 // pred_region
      %187 = dma.done [#allocation4], 128
    $region41: #{tpu_custom_call.1} parent=1 // pred_fallthru
      _
    %188 = vsyncpa [#allocation3], 1
    %189 = vsyncpa [#allocation6], 1
    %190 = vsyncpa [#allocation4], 1

</llo_original>
